<compile_context>
chip_gen: v7x
topology: tpu7x:2x2x1
jax: 0.10.0
libtpu: 0.0.40
codegen_flags: <defaults>
</compile_context>

<pallas_src>
import functools
import math

import jax
import jax.numpy as jnp
from jax.experimental import pallas as pl
from jax.experimental.pallas import tpu as pltpu

_LANE = 128


def _ohem_stats_kernel(logits_ref, tgt_ref, prob_ref, nll_ref, part_ref, *,
                       ignore_index, thresh, num_classes, rows, ts):
    """Per pixel block: streamed softmax stats, true-class prob / NLL, partials."""
    tgt = tgt_ref[0]                                    # (ts, 128) int32
    valid = tgt != ignore_index
    if rows % ts != 0:
        # The last grid block overruns the pixel-row extent (OOB reads are
        # unspecified, OOB writes dropped) -> mask those rows explicitly.
        rid = pl.program_id(1) * ts + jax.lax.broadcasted_iota(
            jnp.int32, tgt.shape, 0)
        valid = jnp.logical_and(valid, rid < rows)

    # Pass 1 over classes: running max + true-class logit (overwrite select,
    # no broadcasted_iota / one-hot sum).
    x0 = logits_ref[0, 0].astype(jnp.float32)           # (ts, 128)
    m = x0
    tl = x0                                             # class-0 logit by default
    for cls in range(1, num_classes):
        xc = logits_ref[0, cls].astype(jnp.float32)
        m = jnp.maximum(m, xc)
        tl = jnp.where(tgt == cls, xc, tl)

    # Pass 2 over classes: exp-sum streamed again from VMEM (no stored exp array).
    s = jnp.exp(x0 - m)
    for cls in range(1, num_classes):
        xc = logits_ref[0, cls].astype(jnp.float32)
        s = s + jnp.exp(xc - m)

    lse = m + jnp.log(s)
    nll = lse - tl                                      # -log p(true class)
    p_true = jnp.exp(tl - lse)

    p_out = jnp.where(valid, p_true, jnp.float32(1.0))  # ignored -> 1 (masked_fill_)
    nll_out = jnp.where(valid, nll, jnp.float32(0.0))   # ignored contribute 0 loss
    prob_ref[0] = p_out
    nll_ref[0] = nll_out

    # Per-block lane-wise partial reductions; the JAX glue finishes the tiny sums,
    # so the common OHEM path never re-reads mask_prob / nll from HBM.
    thr = jnp.float32(thresh)
    kept_le = jnp.logical_and(valid, p_out <= thr)
    cv = jnp.sum(valid.astype(jnp.float32), axis=0, keepdims=True)        # (1,128)
    cl = jnp.sum(kept_le.astype(jnp.float32), axis=0, keepdims=True)
    snl = jnp.sum(jnp.where(kept_le, nll, 0.0), axis=0, keepdims=True)
    snv = jnp.sum(nll_out, axis=0, keepdims=True)
    part_ref[0, 0:1, :] = cv
    part_ref[0, 1:2, :] = cl
    part_ref[0, 2:3, :] = snl
    part_ref[0, 3:4, :] = snv
    part_ref[0, 4:8, :] = jnp.zeros((4, _LANE), jnp.float32)


def _vmem_limit_bytes():
    """Generation-aware scoped-VMEM limit (~3/4 of physical, capped at 96 MiB)."""
    cap = 64 * 1024 * 1024
    try:
        info = pltpu.get_tpu_info()
        cap = int(getattr(info, "vmem_capacity_bytes", cap)) or cap
    except Exception:
        pass
    return int(min(cap * 3 // 4, 96 * 1024 * 1024))


def _pick_ts(rows, num_classes, dtype_bytes, vmem_limit, max_block_px=None):
    """Pixel-rows per block.  The logits block is the dominant VMEM tenant; with
    double buffering + per-pass temporaries, ~vmem_limit/6 per block is safe on
    every generation (incl. v7x's 64 MiB VMEM)."""
    block_budget = max(vmem_limit // 6, 1 << 20)
    max_px = (block_budget // max(num_classes * dtype_bytes, 1)) // _LANE * _LANE
    max_px = max(max_px, _LANE)
    if max_block_px is not None:
        max_px = min(max_px, max(int(max_block_px) // _LANE * _LANE, _LANE))
    max_ts = min(1024, max_px // _LANE)
    max_ts = max(8, (max_ts // 8) * 8)
    if rows <= max_ts:
        return rows                       # single block; any extent == full dim is ok
    return max_ts                         # multiple of 8; grid tail is masked


def ohem_cross_entropy_2d(pred, target, *, ignore_index=255, thresh=0.7,
                          min_kept=10000, _max_block_px=None):
    """Forward of OhemCrossEntropy2dTensor (use_weight=False path). Jittable."""
    # TODO(synk): use_weight=True (class-weighted CrossEntropyLoss) not implemented;
    # the module default is use_weight=False, which is what is reproduced here.
    b, c, h, w = pred.shape
    hw = h * w
    n_real = b * hw

    logits = pred.reshape(b, c, hw)
    tgt = target.reshape(b, hw).astype(jnp.int32)

    if hw % _LANE != 0:
        # TODO(synk): when h*w is not a multiple of 128 we still pay one full
        # copy of the logits (jnp.pad) to keep the free (b,c,rows,128) view; a
        # class-on-sublanes kernel variant would remove it.
        hw_eff = -(-hw // _LANE) * _LANE
        logits = jnp.pad(logits, ((0, 0), (0, 0), (0, hw_eff - hw)))
        tgt = jnp.pad(tgt, ((0, 0), (0, hw_eff - hw)),
                      constant_values=ignore_index)
    else:
        hw_eff = hw

    rows = hw_eff // _LANE
    vmem_limit = _vmem_limit_bytes()
    dtype_bytes = jnp.dtype(pred.dtype).itemsize
    ts = _pick_ts(rows, c, dtype_bytes, vmem_limit, _max_block_px)
    nblk = -(-rows // ts)

    logits = logits.reshape(b, c, rows, _LANE)      # free contiguous reshape
    tgt3 = tgt.reshape(b, rows, _LANE)

    kern = functools.partial(_ohem_stats_kernel, ignore_index=ignore_index,
                             thresh=float(thresh), num_classes=c,
                             rows=rows, ts=ts)
    cost = pl.CostEstimate(
        flops=6 * b * c * hw_eff,
        transcendentals=(c + 2) * b * hw_eff,
        bytes_accessed=(b * c * hw_eff * dtype_bytes + 3 * b * hw_eff * 4
                        + b * nblk * 8 * _LANE * 4))

    mask_prob, nll_arr, part = pl.pallas_call(
        kern,
        out_shape=(jax.ShapeDtypeStruct((b, rows, _LANE), jnp.float32),
                   jax.ShapeDtypeStruct((b, rows, _LANE), jnp.float32),
                   jax.ShapeDtypeStruct((b, nblk * 8, _LANE), jnp.float32)),
        grid=(b, nblk),
        in_specs=[pl.BlockSpec((1, c, ts, _LANE), lambda i, j: (i, 0, j, 0)),
                  pl.BlockSpec((1, ts, _LANE), lambda i, j: (i, j, 0))],
        out_specs=(pl.BlockSpec((1, ts, _LANE), lambda i, j: (i, j, 0)),
                   pl.BlockSpec((1, ts, _LANE), lambda i, j: (i, j, 0)),
                   pl.BlockSpec((1, 8, _LANE), lambda i, j: (i, j, 0))),
        compiler_params=pltpu.CompilerParams(
            dimension_semantics=("parallel", "parallel"),
            vmem_limit_bytes=vmem_limit),
        cost_estimate=cost,
    )(logits, tgt3)

    # ---- OHEM threshold + masked mean: jittable glue, no host round trip.
    part = part.reshape(b, nblk, 8, _LANE)
    num_valid = jnp.sum(part[:, :, 0, :].astype(jnp.int32))
    count_le = jnp.sum(part[:, :, 1, :].astype(jnp.int32))
    sum_nll_le = jnp.sum(part[:, :, 2, :])
    sum_nll_valid = jnp.sum(part[:, :, 3, :])

    k = min(int(min_kept), n_real)
    mk = min(int(min_kept), n_real + 1)
    # OHEM filtering applies iff num_valid > 0 and min_kept <= num_valid;
    # otherwise keep every valid pixel.
    # TODO(synk): the PyTorch print('Labels: ...') on the min_kept > num_valid
    # branch is omitted to keep the whole loss a single jittable graph.
    apply_ohem = jnp.logical_and(num_valid > 0, num_valid >= mk)

    common_loss = sum_nll_le / jnp.maximum(count_le.astype(jnp.float32), 1.0)

    if k > 0:
        def _common_fn():
            return common_loss

        def _rare_fn():
            # Rare path: fewer than min_kept pixels fall under thresh, so the
            # exact k-th smallest prob is needed (ignored/padded pixels are 1.0
            # and cannot change the k-th value).
            flat = mask_prob.reshape(-1)
            kth = -jax.lax.top_k(-flat, k)[0][k - 1]
            thr = jnp.maximum(kth, jnp.float32(thresh))
            keptm = jnp.logical_and(tgt3 != ignore_index, mask_prob <= thr)
            ls = jnp.sum(jnp.where(keptm, nll_arr, 0.0))
            cnt = jnp.sum(keptm.astype(jnp.float32))
            return ls / jnp.maximum(cnt, 1.0)

        # Common case: count(valid & prob<=thresh) >= k  =>  kth <= thresh  =>
        # threshold == thresh and the partial sums already hold the answer.
        take_cheap = jnp.logical_or(count_le >= k, jnp.logical_not(apply_ohem))
        loss_ohem = jax.lax.cond(take_cheap, _common_fn, _rare_fn)
    else:
        loss_ohem = jnp.where(count_le > 0, common_loss, jnp.float32(0.0))

    num_valid_f = num_valid.astype(jnp.float32)
    # CrossEntropyLoss(reduction='mean', ignore_index=...): mean over kept pixels;
    # guard the all-ignored case instead of emitting NaN (documented deviation).
    loss_all = jnp.where(num_valid > 0,
                         sum_nll_valid / jnp.maximum(num_valid_f, 1.0),
                         jnp.float32(0.0))
    return jnp.where(apply_ohem, loss_ohem, loss_all)


def _reference(pred, target, ignore_index, thresh, min_kept):
    """Pure-JAX (eager) mirror of the PyTorch forward, for validation."""
    b, c, h, w = pred.shape
    n = b * h * w
    t = target.reshape(-1)
    valid = t != ignore_index
    tc = jnp.where(valid, t, 0)
    logits = jnp.transpose(pred.astype(jnp.float32), (0, 2, 3, 1)).reshape(n, c)
    logp = jax.nn.log_softmax(logits, axis=-1)
    rows_idx = jnp.arange(n)
    p_true = jnp.where(valid, jnp.exp(logp[rows_idx, tc]), 1.0)
    num_valid = int(jnp.sum(valid))
    if min_kept > num_valid:
        kept = valid
    elif num_valid > 0:
        threshold = jnp.float32(thresh)
        if min_kept > 0:
            kth = jnp.sort(p_true)[min(n, min_kept) - 1]
            threshold = jnp.where(kth > thresh, kth, threshold)
        kept = valid & (p_true <= threshold)
    else:
        kept = valid
    nll = -logp[rows_idx, tc]
    return jnp.sum(jnp.where(kept, nll, 0.0)) / jnp.sum(kept)


if __name__ == "__main__":
    key = jax.random.PRNGKey(0)
    ignore_index = 255

    def make_inputs(k, b, c, h, w, dtype=jnp.float32):
        k1, k2, k3 = jax.random.split(k, 3)
        pred = jax.random.normal(k1, (b, c, h, w), dtype=jnp.float32).astype(dtype)
        target = jax.random.randint(k2, (b, h, w), 0, c, dtype=jnp.int32)
        ign = jax.random.uniform(k3, (b, h, w)) < 0.1
        return pred, jnp.where(ign, ignore_index, target)

    def run(pred, target, thresh, min_kept, **kw):
        fn = jax.jit(functools.partial(
            ohem_cross_entropy_2d, ignore_index=ignore_index, thresh=thresh,
            min_kept=min_kept, **kw))
        return float(jax.block_until_ready(fn(pred, target)))

    def check(name, pred, target, thresh, min_kept, tol=1e-3, **kw):
        got = run(pred, target, thresh, min_kept, **kw)
        want = float(_reference(pred.astype(jnp.float32), target,
                                ignore_index, thresh, min_kept))
        assert math.isfinite(got), (name, got)
        assert abs(got - want) <= tol * max(1.0, abs(want)), (name, got, want)

    k0, k4, k5 = jax.random.split(key, 3)
    pred, target = make_inputs(k0, 2, 19, 16, 16)

    # 1) common OHEM path (threshold == thresh; no top_k executed at runtime).
    check("common", pred, target, thresh=0.7, min_kept=50)
    # 2) rare path: kth-smallest prob > thresh -> lax.cond falls back to top_k.
    check("rare_topk", pred, target, thresh=0.001, min_kept=64, tol=2e-2)
    # 3) min_kept > num_valid -> no OHEM filtering, plain masked mean.
    check("keep_all", pred, target, thresh=0.7, min_kept=100000)
    # 4) grid tail overrun (rows % ts != 0) with a forced-small pixel block.
    pred4, target4 = make_inputs(k4, 2, 19, 40, 64)
    check("tail_mask", pred4, target4, thresh=0.7, min_kept=50,
          _max_block_px=1024)
    # 5) h*w not a multiple of 128 -> padded fallback path.
    pred5, target5 = make_inputs(k5, 2, 19, 9, 13)
    check("pad_path", pred5, target5, thresh=0.7, min_kept=20)
    # 6) bf16 logits path (no upstream f32 cast; kernel upcasts per class slice).
    got_bf16 = run(pred.astype(jnp.bfloat16), target, thresh=0.7, min_kept=50)
    want_f32 = float(_reference(pred, target, ignore_index, 0.7, 50))
    assert math.isfinite(got_bf16), got_bf16
    assert abs(got_bf16 - want_f32) <= 5e-2 * max(1.0, abs(want_f32)), (
        got_bf16, want_f32)

    print("KERNEL_OK")
</pallas_src>

<mosaic_0001>
module attributes {stable_mosaic.version = 11 : i64} {
  func.func @_ohem_stats_kernel(%arg0: i32, %arg1: i32, %arg2: memref<1x19x2x128xf32, #tpu.memory_space<vmem>>, %arg3: memref<1x2x128xi32, #tpu.memory_space<vmem>>, %arg4: memref<1x2x128xf32, #tpu.memory_space<vmem>>, %arg5: memref<1x2x128xf32, #tpu.memory_space<vmem>>, %arg6: memref<1x8x128xf32, #tpu.memory_space<vmem>>) attributes {dimension_semantics = [#tpu.dimension_semantics<parallel>, #tpu.dimension_semantics<parallel>], iteration_bounds = array<i64: 2, 1>, scalar_prefetch = 0 : i64, scratch_operands = 0 : i64, tpu.core_type = #tpu.core_type<tc>, window_params = [{transform_indices = @transform_0, window_bounds = array<i64: 1, 19, 2, 128>}, {transform_indices = @transform_1, window_bounds = array<i64: 1, 2, 128>}, {transform_indices = @transform_2, window_bounds = array<i64: 1, 2, 128>}, {transform_indices = @transform_3, window_bounds = array<i64: 1, 2, 128>}, {transform_indices = @transform_4, window_bounds = array<i64: 1, 8, 128>}]} {
    %c0 = arith.constant 0 : index
    %c0_0 = arith.constant 0 : index
    %c0_1 = arith.constant 0 : index
    %0 = vector.load %arg3[%c0, %c0_0, %c0_1] : memref<1x2x128xi32, #tpu.memory_space<vmem>>, vector<1x2x128xi32>
    %1 = vector.shape_cast %0 : vector<1x2x128xi32> to vector<2x128xi32>
    %c255_i32 = arith.constant 255 : i32
    %2 = vector.broadcast %c255_i32 : i32 to vector<2x128xi32>
    %3 = arith.cmpi ne, %1, %2 : vector<2x128xi32>
    %c0_2 = arith.constant 0 : index
    %c0_3 = arith.constant 0 : index
    %c0_4 = arith.constant 0 : index
    %c0_5 = arith.constant 0 : index
    %4 = vector.load %arg2[%c0_2, %c0_3, %c0_4, %c0_5] : memref<1x19x2x128xf32, #tpu.memory_space<vmem>>, vector<1x1x2x128xf32>
    %5 = vector.shape_cast %4 : vector<1x1x2x128xf32> to vector<2x128xf32>
    %c0_6 = arith.constant 0 : index
    %c1 = arith.constant 1 : index
    %c0_7 = arith.constant 0 : index
    %c0_8 = arith.constant 0 : index
    %6 = vector.load %arg2[%c0_6, %c1, %c0_7, %c0_8] : memref<1x19x2x128xf32, #tpu.memory_space<vmem>>, vector<1x1x2x128xf32>
    %7 = vector.shape_cast %6 : vector<1x1x2x128xf32> to vector<2x128xf32>
    %8 = arith.maximumf %5, %7 : vector<2x128xf32>
    %c1_i32 = arith.constant 1 : i32
    %9 = vector.broadcast %c1_i32 : i32 to vector<2x128xi32>
    %10 = arith.cmpi eq, %1, %9 : vector<2x128xi32>
    %11 = arith.select %10, %7, %5 : vector<2x128xi1>, vector<2x128xf32>
    %c0_9 = arith.constant 0 : index
    %c2 = arith.constant 2 : index
    %c0_10 = arith.constant 0 : index
    %c0_11 = arith.constant 0 : index
    %12 = vector.load %arg2[%c0_9, %c2, %c0_10, %c0_11] : memref<1x19x2x128xf32, #tpu.memory_space<vmem>>, vector<1x1x2x128xf32>
    %13 = vector.shape_cast %12 : vector<1x1x2x128xf32> to vector<2x128xf32>
    %14 = arith.maximumf %8, %13 : vector<2x128xf32>
    %c2_i32 = arith.constant 2 : i32
    %15 = vector.broadcast %c2_i32 : i32 to vector<2x128xi32>
    %16 = arith.cmpi eq, %1, %15 : vector<2x128xi32>
    %17 = arith.select %16, %13, %11 : vector<2x128xi1>, vector<2x128xf32>
    %c0_12 = arith.constant 0 : index
    %c3 = arith.constant 3 : index
    %c0_13 = arith.constant 0 : index
    %c0_14 = arith.constant 0 : index
    %18 = vector.load %arg2[%c0_12, %c3, %c0_13, %c0_14] : memref<1x19x2x128xf32, #tpu.memory_space<vmem>>, vector<1x1x2x128xf32>
    %19 = vector.shape_cast %18 : vector<1x1x2x128xf32> to vector<2x128xf32>
    %20 = arith.maximumf %14, %19 : vector<2x128xf32>
    %c3_i32 = arith.constant 3 : i32
    %21 = vector.broadcast %c3_i32 : i32 to vector<2x128xi32>
    %22 = arith.cmpi eq, %1, %21 : vector<2x128xi32>
    %23 = arith.select %22, %19, %17 : vector<2x128xi1>, vector<2x128xf32>
    %c0_15 = arith.constant 0 : index
    %c4 = arith.constant 4 : index
    %c0_16 = arith.constant 0 : index
    %c0_17 = arith.constant 0 : index
    %24 = vector.load %arg2[%c0_15, %c4, %c0_16, %c0_17] : memref<1x19x2x128xf32, #tpu.memory_space<vmem>>, vector<1x1x2x128xf32>
    %25 = vector.shape_cast %24 : vector<1x1x2x128xf32> to vector<2x128xf32>
    %26 = arith.maximumf %20, %25 : vector<2x128xf32>
    %c4_i32 = arith.constant 4 : i32
    %27 = vector.broadcast %c4_i32 : i32 to vector<2x128xi32>
    %28 = arith.cmpi eq, %1, %27 : vector<2x128xi32>
    %29 = arith.select %28, %25, %23 : vector<2x128xi1>, vector<2x128xf32>
    %c0_18 = arith.constant 0 : index
    %c5 = arith.constant 5 : index
    %c0_19 = arith.constant 0 : index
    %c0_20 = arith.constant 0 : index
    %30 = vector.load %arg2[%c0_18, %c5, %c0_19, %c0_20] : memref<1x19x2x128xf32, #tpu.memory_space<vmem>>, vector<1x1x2x128xf32>
    %31 = vector.shape_cast %30 : vector<1x1x2x128xf32> to vector<2x128xf32>
    %32 = arith.maximumf %26, %31 : vector<2x128xf32>
    %c5_i32 = arith.constant 5 : i32
    %33 = vector.broadcast %c5_i32 : i32 to vector<2x128xi32>
    %34 = arith.cmpi eq, %1, %33 : vector<2x128xi32>
    %35 = arith.select %34, %31, %29 : vector<2x128xi1>, vector<2x128xf32>
    %c0_21 = arith.constant 0 : index
    %c6 = arith.constant 6 : index
    %c0_22 = arith.constant 0 : index
    %c0_23 = arith.constant 0 : index
    %36 = vector.load %arg2[%c0_21, %c6, %c0_22, %c0_23] : memref<1x19x2x128xf32, #tpu.memory_space<vmem>>, vector<1x1x2x128xf32>
    %37 = vector.shape_cast %36 : vector<1x1x2x128xf32> to vector<2x128xf32>
    %38 = arith.maximumf %32, %37 : vector<2x128xf32>
    %c6_i32 = arith.constant 6 : i32
    %39 = vector.broadcast %c6_i32 : i32 to vector<2x128xi32>
    %40 = arith.cmpi eq, %1, %39 : vector<2x128xi32>
    %41 = arith.select %40, %37, %35 : vector<2x128xi1>, vector<2x128xf32>
    %c0_24 = arith.constant 0 : index
    %c7 = arith.constant 7 : index
    %c0_25 = arith.constant 0 : index
    %c0_26 = arith.constant 0 : index
    %42 = vector.load %arg2[%c0_24, %c7, %c0_25, %c0_26] : memref<1x19x2x128xf32, #tpu.memory_space<vmem>>, vector<1x1x2x128xf32>
    %43 = vector.shape_cast %42 : vector<1x1x2x128xf32> to vector<2x128xf32>
    %44 = arith.maximumf %38, %43 : vector<2x128xf32>
    %c7_i32 = arith.constant 7 : i32
    %45 = vector.broadcast %c7_i32 : i32 to vector<2x128xi32>
    %46 = arith.cmpi eq, %1, %45 : vector<2x128xi32>
    %47 = arith.select %46, %43, %41 : vector<2x128xi1>, vector<2x128xf32>
    %c0_27 = arith.constant 0 : index
    %c8 = arith.constant 8 : index
    %c0_28 = arith.constant 0 : index
    %c0_29 = arith.constant 0 : index
    %48 = vector.load %arg2[%c0_27, %c8, %c0_28, %c0_29] : memref<1x19x2x128xf32, #tpu.memory_space<vmem>>, vector<1x1x2x128xf32>
    %49 = vector.shape_cast %48 : vector<1x1x2x128xf32> to vector<2x128xf32>
    %50 = arith.maximumf %44, %49 : vector<2x128xf32>
    %c8_i32 = arith.constant 8 : i32
    %51 = vector.broadcast %c8_i32 : i32 to vector<2x128xi32>
    %52 = arith.cmpi eq, %1, %51 : vector<2x128xi32>
    %53 = arith.select %52, %49, %47 : vector<2x128xi1>, vector<2x128xf32>
    %c0_30 = arith.constant 0 : index
    %c9 = arith.constant 9 : index
    %c0_31 = arith.constant 0 : index
    %c0_32 = arith.constant 0 : index
    %54 = vector.load %arg2[%c0_30, %c9, %c0_31, %c0_32] : memref<1x19x2x128xf32, #tpu.memory_space<vmem>>, vector<1x1x2x128xf32>
    %55 = vector.shape_cast %54 : vector<1x1x2x128xf32> to vector<2x128xf32>
    %56 = arith.maximumf %50, %55 : vector<2x128xf32>
    %c9_i32 = arith.constant 9 : i32
    %57 = vector.broadcast %c9_i32 : i32 to vector<2x128xi32>
    %58 = arith.cmpi eq, %1, %57 : vector<2x128xi32>
    %59 = arith.select %58, %55, %53 : vector<2x128xi1>, vector<2x128xf32>
    %c0_33 = arith.constant 0 : index
    %c10 = arith.constant 10 : index
    %c0_34 = arith.constant 0 : index
    %c0_35 = arith.constant 0 : index
    %60 = vector.load %arg2[%c0_33, %c10, %c0_34, %c0_35] : memref<1x19x2x128xf32, #tpu.memory_space<vmem>>, vector<1x1x2x128xf32>
    %61 = vector.shape_cast %60 : vector<1x1x2x128xf32> to vector<2x128xf32>
    %62 = arith.maximumf %56, %61 : vector<2x128xf32>
    %c10_i32 = arith.constant 10 : i32
    %63 = vector.broadcast %c10_i32 : i32 to vector<2x128xi32>
    %64 = arith.cmpi eq, %1, %63 : vector<2x128xi32>
    %65 = arith.select %64, %61, %59 : vector<2x128xi1>, vector<2x128xf32>
    %c0_36 = arith.constant 0 : index
    %c11 = arith.constant 11 : index
    %c0_37 = arith.constant 0 : index
    %c0_38 = arith.constant 0 : index
    %66 = vector.load %arg2[%c0_36, %c11, %c0_37, %c0_38] : memref<1x19x2x128xf32, #tpu.memory_space<vmem>>, vector<1x1x2x128xf32>
    %67 = vector.shape_cast %66 : vector<1x1x2x128xf32> to vector<2x128xf32>
    %68 = arith.maximumf %62, %67 : vector<2x128xf32>
    %c11_i32 = arith.constant 11 : i32
    %69 = vector.broadcast %c11_i32 : i32 to vector<2x128xi32>
    %70 = arith.cmpi eq, %1, %69 : vector<2x128xi32>
    %71 = arith.select %70, %67, %65 : vector<2x128xi1>, vector<2x128xf32>
    %c0_39 = arith.constant 0 : index
    %c12 = arith.constant 12 : index
    %c0_40 = arith.constant 0 : index
    %c0_41 = arith.constant 0 : index
    %72 = vector.load %arg2[%c0_39, %c12, %c0_40, %c0_41] : memref<1x19x2x128xf32, #tpu.memory_space<vmem>>, vector<1x1x2x128xf32>
    %73 = vector.shape_cast %72 : vector<1x1x2x128xf32> to vector<2x128xf32>
    %74 = arith.maximumf %68, %73 : vector<2x128xf32>
    %c12_i32 = arith.constant 12 : i32
    %75 = vector.broadcast %c12_i32 : i32 to vector<2x128xi32>
    %76 = arith.cmpi eq, %1, %75 : vector<2x128xi32>
    %77 = arith.select %76, %73, %71 : vector<2x128xi1>, vector<2x128xf32>
    %c0_42 = arith.constant 0 : index
    %c13 = arith.constant 13 : index
    %c0_43 = arith.constant 0 : index
    %c0_44 = arith.constant 0 : index
    %78 = vector.load %arg2[%c0_42, %c13, %c0_43, %c0_44] : memref<1x19x2x128xf32, #tpu.memory_space<vmem>>, vector<1x1x2x128xf32>
    %79 = vector.shape_cast %78 : vector<1x1x2x128xf32> to vector<2x128xf32>
    %80 = arith.maximumf %74, %79 : vector<2x128xf32>
    %c13_i32 = arith.constant 13 : i32
    %81 = vector.broadcast %c13_i32 : i32 to vector<2x128xi32>
    %82 = arith.cmpi eq, %1, %81 : vector<2x128xi32>
    %83 = arith.select %82, %79, %77 : vector<2x128xi1>, vector<2x128xf32>
    %c0_45 = arith.constant 0 : index
    %c14 = arith.constant 14 : index
    %c0_46 = arith.constant 0 : index
    %c0_47 = arith.constant 0 : index
    %84 = vector.load %arg2[%c0_45, %c14, %c0_46, %c0_47] : memref<1x19x2x128xf32, #tpu.memory_space<vmem>>, vector<1x1x2x128xf32>
    %85 = vector.shape_cast %84 : vector<1x1x2x128xf32> to vector<2x128xf32>
    %86 = arith.maximumf %80, %85 : vector<2x128xf32>
    %c14_i32 = arith.constant 14 : i32
    %87 = vector.broadcast %c14_i32 : i32 to vector<2x128xi32>
    %88 = arith.cmpi eq, %1, %87 : vector<2x128xi32>
    %89 = arith.select %88, %85, %83 : vector<2x128xi1>, vector<2x128xf32>
    %c0_48 = arith.constant 0 : index
    %c15 = arith.constant 15 : index
    %c0_49 = arith.constant 0 : index
    %c0_50 = arith.constant 0 : index
    %90 = vector.load %arg2[%c0_48, %c15, %c0_49, %c0_50] : memref<1x19x2x128xf32, #tpu.memory_space<vmem>>, vector<1x1x2x128xf32>
    %91 = vector.shape_cast %90 : vector<1x1x2x128xf32> to vector<2x128xf32>
    %92 = arith.maximumf %86, %91 : vector<2x128xf32>
    %c15_i32 = arith.constant 15 : i32
    %93 = vector.broadcast %c15_i32 : i32 to vector<2x128xi32>
    %94 = arith.cmpi eq, %1, %93 : vector<2x128xi32>
    %95 = arith.select %94, %91, %89 : vector<2x128xi1>, vector<2x128xf32>
    %c0_51 = arith.constant 0 : index
    %c16 = arith.constant 16 : index
    %c0_52 = arith.constant 0 : index
    %c0_53 = arith.constant 0 : index
    %96 = vector.load %arg2[%c0_51, %c16, %c0_52, %c0_53] : memref<1x19x2x128xf32, #tpu.memory_space<vmem>>, vector<1x1x2x128xf32>
    %97 = vector.shape_cast %96 : vector<1x1x2x128xf32> to vector<2x128xf32>
    %98 = arith.maximumf %92, %97 : vector<2x128xf32>
    %c16_i32 = arith.constant 16 : i32
    %99 = vector.broadcast %c16_i32 : i32 to vector<2x128xi32>
    %100 = arith.cmpi eq, %1, %99 : vector<2x128xi32>
    %101 = arith.select %100, %97, %95 : vector<2x128xi1>, vector<2x128xf32>
    %c0_54 = arith.constant 0 : index
    %c17 = arith.constant 17 : index
    %c0_55 = arith.constant 0 : index
    %c0_56 = arith.constant 0 : index
    %102 = vector.load %arg2[%c0_54, %c17, %c0_55, %c0_56] : memref<1x19x2x128xf32, #tpu.memory_space<vmem>>, vector<1x1x2x128xf32>
    %103 = vector.shape_cast %102 : vector<1x1x2x128xf32> to vector<2x128xf32>
    %104 = arith.maximumf %98, %103 : vector<2x128xf32>
    %c17_i32 = arith.constant 17 : i32
    %105 = vector.broadcast %c17_i32 : i32 to vector<2x128xi32>
    %106 = arith.cmpi eq, %1, %105 : vector<2x128xi32>
    %107 = arith.select %106, %103, %101 : vector<2x128xi1>, vector<2x128xf32>
    %c0_57 = arith.constant 0 : index
    %c18 = arith.constant 18 : index
    %c0_58 = arith.constant 0 : index
    %c0_59 = arith.constant 0 : index
    %108 = vector.load %arg2[%c0_57, %c18, %c0_58, %c0_59] : memref<1x19x2x128xf32, #tpu.memory_space<vmem>>, vector<1x1x2x128xf32>
    %109 = vector.shape_cast %108 : vector<1x1x2x128xf32> to vector<2x128xf32>
    %110 = arith.maximumf %104, %109 : vector<2x128xf32>
    %c18_i32 = arith.constant 18 : i32
    %111 = vector.broadcast %c18_i32 : i32 to vector<2x128xi32>
    %112 = arith.cmpi eq, %1, %111 : vector<2x128xi32>
    %113 = arith.select %112, %109, %107 : vector<2x128xi1>, vector<2x128xf32>
    %114 = arith.subf %5, %110 : vector<2x128xf32>
    %115 = math.exp %114 : vector<2x128xf32>
    %c0_60 = arith.constant 0 : index
    %c1_61 = arith.constant 1 : index
    %c0_62 = arith.constant 0 : index
    %c0_63 = arith.constant 0 : index
    %116 = vector.load %arg2[%c0_60, %c1_61, %c0_62, %c0_63] : memref<1x19x2x128xf32, #tpu.memory_space<vmem>>, vector<1x1x2x128xf32>
    %117 = vector.shape_cast %116 : vector<1x1x2x128xf32> to vector<2x128xf32>
    %118 = arith.subf %117, %110 : vector<2x128xf32>
    %119 = math.exp %118 : vector<2x128xf32>
    %120 = arith.addf %115, %119 : vector<2x128xf32>
    %c0_64 = arith.constant 0 : index
    %c2_65 = arith.constant 2 : index
    %c0_66 = arith.constant 0 : index
    %c0_67 = arith.constant 0 : index
    %121 = vector.load %arg2[%c0_64, %c2_65, %c0_66, %c0_67] : memref<1x19x2x128xf32, #tpu.memory_space<vmem>>, vector<1x1x2x128xf32>
    %122 = vector.shape_cast %121 : vector<1x1x2x128xf32> to vector<2x128xf32>
    %123 = arith.subf %122, %110 : vector<2x128xf32>
    %124 = math.exp %123 : vector<2x128xf32>
    %125 = arith.addf %120, %124 : vector<2x128xf32>
    %c0_68 = arith.constant 0 : index
    %c3_69 = arith.constant 3 : index
    %c0_70 = arith.constant 0 : index
    %c0_71 = arith.constant 0 : index
    %126 = vector.load %arg2[%c0_68, %c3_69, %c0_70, %c0_71] : memref<1x19x2x128xf32, #tpu.memory_space<vmem>>, vector<1x1x2x128xf32>
    %127 = vector.shape_cast %126 : vector<1x1x2x128xf32> to vector<2x128xf32>
    %128 = arith.subf %127, %110 : vector<2x128xf32>
    %129 = math.exp %128 : vector<2x128xf32>
    %130 = arith.addf %125, %129 : vector<2x128xf32>
    %c0_72 = arith.constant 0 : index
    %c4_73 = arith.constant 4 : index
    %c0_74 = arith.constant 0 : index
    %c0_75 = arith.constant 0 : index
    %131 = vector.load %arg2[%c0_72, %c4_73, %c0_74, %c0_75] : memref<1x19x2x128xf32, #tpu.memory_space<vmem>>, vector<1x1x2x128xf32>
    %132 = vector.shape_cast %131 : vector<1x1x2x128xf32> to vector<2x128xf32>
    %133 = arith.subf %132, %110 : vector<2x128xf32>
    %134 = math.exp %133 : vector<2x128xf32>
    %135 = arith.addf %130, %134 : vector<2x128xf32>
    %c0_76 = arith.constant 0 : index
    %c5_77 = arith.constant 5 : index
    %c0_78 = arith.constant 0 : index
    %c0_79 = arith.constant 0 : index
    %136 = vector.load %arg2[%c0_76, %c5_77, %c0_78, %c0_79] : memref<1x19x2x128xf32, #tpu.memory_space<vmem>>, vector<1x1x2x128xf32>
    %137 = vector.shape_cast %136 : vector<1x1x2x128xf32> to vector<2x128xf32>
    %138 = arith.subf %137, %110 : vector<2x128xf32>
    %139 = math.exp %138 : vector<2x128xf32>
    %140 = arith.addf %135, %139 : vector<2x128xf32>
    %c0_80 = arith.constant 0 : index
    %c6_81 = arith.constant 6 : index
    %c0_82 = arith.constant 0 : index
    %c0_83 = arith.constant 0 : index
    %141 = vector.load %arg2[%c0_80, %c6_81, %c0_82, %c0_83] : memref<1x19x2x128xf32, #tpu.memory_space<vmem>>, vector<1x1x2x128xf32>
    %142 = vector.shape_cast %141 : vector<1x1x2x128xf32> to vector<2x128xf32>
    %143 = arith.subf %142, %110 : vector<2x128xf32>
    %144 = math.exp %143 : vector<2x128xf32>
    %145 = arith.addf %140, %144 : vector<2x128xf32>
    %c0_84 = arith.constant 0 : index
    %c7_85 = arith.constant 7 : index
    %c0_86 = arith.constant 0 : index
    %c0_87 = arith.constant 0 : index
    %146 = vector.load %arg2[%c0_84, %c7_85, %c0_86, %c0_87] : memref<1x19x2x128xf32, #tpu.memory_space<vmem>>, vector<1x1x2x128xf32>
    %147 = vector.shape_cast %146 : vector<1x1x2x128xf32> to vector<2x128xf32>
    %148 = arith.subf %147, %110 : vector<2x128xf32>
    %149 = math.exp %148 : vector<2x128xf32>
    %150 = arith.addf %145, %149 : vector<2x128xf32>
    %c0_88 = arith.constant 0 : index
    %c8_89 = arith.constant 8 : index
    %c0_90 = arith.constant 0 : index
    %c0_91 = arith.constant 0 : index
    %151 = vector.load %arg2[%c0_88, %c8_89, %c0_90, %c0_91] : memref<1x19x2x128xf32, #tpu.memory_space<vmem>>, vector<1x1x2x128xf32>
    %152 = vector.shape_cast %151 : vector<1x1x2x128xf32> to vector<2x128xf32>
    %153 = arith.subf %152, %110 : vector<2x128xf32>
    %154 = math.exp %153 : vector<2x128xf32>
    %155 = arith.addf %150, %154 : vector<2x128xf32>
    %c0_92 = arith.constant 0 : index
    %c9_93 = arith.constant 9 : index
    %c0_94 = arith.constant 0 : index
    %c0_95 = arith.constant 0 : index
    %156 = vector.load %arg2[%c0_92, %c9_93, %c0_94, %c0_95] : memref<1x19x2x128xf32, #tpu.memory_space<vmem>>, vector<1x1x2x128xf32>
    %157 = vector.shape_cast %156 : vector<1x1x2x128xf32> to vector<2x128xf32>
    %158 = arith.subf %157, %110 : vector<2x128xf32>
    %159 = math.exp %158 : vector<2x128xf32>
    %160 = arith.addf %155, %159 : vector<2x128xf32>
    %c0_96 = arith.constant 0 : index
    %c10_97 = arith.constant 10 : index
    %c0_98 = arith.constant 0 : index
    %c0_99 = arith.constant 0 : index
    %161 = vector.load %arg2[%c0_96, %c10_97, %c0_98, %c0_99] : memref<1x19x2x128xf32, #tpu.memory_space<vmem>>, vector<1x1x2x128xf32>
    %162 = vector.shape_cast %161 : vector<1x1x2x128xf32> to vector<2x128xf32>
    %163 = arith.subf %162, %110 : vector<2x128xf32>
    %164 = math.exp %163 : vector<2x128xf32>
    %165 = arith.addf %160, %164 : vector<2x128xf32>
    %c0_100 = arith.constant 0 : index
    %c11_101 = arith.constant 11 : index
    %c0_102 = arith.constant 0 : index
    %c0_103 = arith.constant 0 : index
    %166 = vector.load %arg2[%c0_100, %c11_101, %c0_102, %c0_103] : memref<1x19x2x128xf32, #tpu.memory_space<vmem>>, vector<1x1x2x128xf32>
    %167 = vector.shape_cast %166 : vector<1x1x2x128xf32> to vector<2x128xf32>
    %168 = arith.subf %167, %110 : vector<2x128xf32>
    %169 = math.exp %168 : vector<2x128xf32>
    %170 = arith.addf %165, %169 : vector<2x128xf32>
    %c0_104 = arith.constant 0 : index
    %c12_105 = arith.constant 12 : index
    %c0_106 = arith.constant 0 : index
    %c0_107 = arith.constant 0 : index
    %171 = vector.load %arg2[%c0_104, %c12_105, %c0_106, %c0_107] : memref<1x19x2x128xf32, #tpu.memory_space<vmem>>, vector<1x1x2x128xf32>
    %172 = vector.shape_cast %171 : vector<1x1x2x128xf32> to vector<2x128xf32>
    %173 = arith.subf %172, %110 : vector<2x128xf32>
    %174 = math.exp %173 : vector<2x128xf32>
    %175 = arith.addf %170, %174 : vector<2x128xf32>
    %c0_108 = arith.constant 0 : index
    %c13_109 = arith.constant 13 : index
    %c0_110 = arith.constant 0 : index
    %c0_111 = arith.constant 0 : index
    %176 = vector.load %arg2[%c0_108, %c13_109, %c0_110, %c0_111] : memref<1x19x2x128xf32, #tpu.memory_space<vmem>>, vector<1x1x2x128xf32>
    %177 = vector.shape_cast %176 : vector<1x1x2x128xf32> to vector<2x128xf32>
    %178 = arith.subf %177, %110 : vector<2x128xf32>
    %179 = math.exp %178 : vector<2x128xf32>
    %180 = arith.addf %175, %179 : vector<2x128xf32>
    %c0_112 = arith.constant 0 : index
    %c14_113 = arith.constant 14 : index
    %c0_114 = arith.constant 0 : index
    %c0_115 = arith.constant 0 : index
    %181 = vector.load %arg2[%c0_112, %c14_113, %c0_114, %c0_115] : memref<1x19x2x128xf32, #tpu.memory_space<vmem>>, vector<1x1x2x128xf32>
    %182 = vector.shape_cast %181 : vector<1x1x2x128xf32> to vector<2x128xf32>
    %183 = arith.subf %182, %110 : vector<2x128xf32>
    %184 = math.exp %183 : vector<2x128xf32>
    %185 = arith.addf %180, %184 : vector<2x128xf32>
    %c0_116 = arith.constant 0 : index
    %c15_117 = arith.constant 15 : index
    %c0_118 = arith.constant 0 : index
    %c0_119 = arith.constant 0 : index
    %186 = vector.load %arg2[%c0_116, %c15_117, %c0_118, %c0_119] : memref<1x19x2x128xf32, #tpu.memory_space<vmem>>, vector<1x1x2x128xf32>
    %187 = vector.shape_cast %186 : vector<1x1x2x128xf32> to vector<2x128xf32>
    %188 = arith.subf %187, %110 : vector<2x128xf32>
    %189 = math.exp %188 : vector<2x128xf32>
    %190 = arith.addf %185, %189 : vector<2x128xf32>
    %c0_120 = arith.constant 0 : index
    %c16_121 = arith.constant 16 : index
    %c0_122 = arith.constant 0 : index
    %c0_123 = arith.constant 0 : index
    %191 = vector.load %arg2[%c0_120, %c16_121, %c0_122, %c0_123] : memref<1x19x2x128xf32, #tpu.memory_space<vmem>>, vector<1x1x2x128xf32>
    %192 = vector.shape_cast %191 : vector<1x1x2x128xf32> to vector<2x128xf32>
    %193 = arith.subf %192, %110 : vector<2x128xf32>
    %194 = math.exp %193 : vector<2x128xf32>
    %195 = arith.addf %190, %194 : vector<2x128xf32>
    %c0_124 = arith.constant 0 : index
    %c17_125 = arith.constant 17 : index
    %c0_126 = arith.constant 0 : index
    %c0_127 = arith.constant 0 : index
    %196 = vector.load %arg2[%c0_124, %c17_125, %c0_126, %c0_127] : memref<1x19x2x128xf32, #tpu.memory_space<vmem>>, vector<1x1x2x128xf32>
    %197 = vector.shape_cast %196 : vector<1x1x2x128xf32> to vector<2x128xf32>
    %198 = arith.subf %197, %110 : vector<2x128xf32>
    %199 = math.exp %198 : vector<2x128xf32>
    %200 = arith.addf %195, %199 : vector<2x128xf32>
    %c0_128 = arith.constant 0 : index
    %c18_129 = arith.constant 18 : index
    %c0_130 = arith.constant 0 : index
    %c0_131 = arith.constant 0 : index
    %201 = vector.load %arg2[%c0_128, %c18_129, %c0_130, %c0_131] : memref<1x19x2x128xf32, #tpu.memory_space<vmem>>, vector<1x1x2x128xf32>
    %202 = vector.shape_cast %201 : vector<1x1x2x128xf32> to vector<2x128xf32>
    %203 = arith.subf %202, %110 : vector<2x128xf32>
    %204 = math.exp %203 : vector<2x128xf32>
    %205 = arith.addf %200, %204 : vector<2x128xf32>
    %206 = math.log %205 : vector<2x128xf32>
    %207 = arith.addf %110, %206 : vector<2x128xf32>
    %208 = arith.subf %207, %113 : vector<2x128xf32>
    %209 = arith.subf %113, %207 : vector<2x128xf32>
    %210 = math.exp %209 : vector<2x128xf32>
    %cst = arith.constant 1.000000e+00 : f32
    %211 = vector.broadcast %cst : f32 to vector<2x128xf32>
    %212 = arith.select %3, %210, %211 : vector<2x128xi1>, vector<2x128xf32>
    %cst_132 = arith.constant 0.000000e+00 : f32
    %213 = vector.broadcast %cst_132 : f32 to vector<2x128xf32>
    %214 = arith.select %3, %208, %213 : vector<2x128xi1>, vector<2x128xf32>
    %c0_133 = arith.constant 0 : index
    %c0_134 = arith.constant 0 : index
    %c0_135 = arith.constant 0 : index
    %215 = vector.load %arg4[%c0_133, %c0_134, %c0_135] : memref<1x2x128xf32, #tpu.memory_space<vmem>>, vector<1x2x128xf32>
    %216 = vector.shape_cast %215 : vector<1x2x128xf32> to vector<2x128xf32>
    %217 = vector.shape_cast %212 : vector<2x128xf32> to vector<1x2x128xf32>
    tpu.vector_store %arg4[%c0_133, %c0_134, %c0_135], %217 {strides = array<i32>} : memref<1x2x128xf32, #tpu.memory_space<vmem>>, vector<1x2x128xf32>,
    %c0_136 = arith.constant 0 : index
    %c0_137 = arith.constant 0 : index
    %c0_138 = arith.constant 0 : index
    %218 = vector.load %arg5[%c0_136, %c0_137, %c0_138] : memref<1x2x128xf32, #tpu.memory_space<vmem>>, vector<1x2x128xf32>
    %219 = vector.shape_cast %218 : vector<1x2x128xf32> to vector<2x128xf32>
    %220 = vector.shape_cast %214 : vector<2x128xf32> to vector<1x2x128xf32>
    tpu.vector_store %arg5[%c0_136, %c0_137, %c0_138], %220 {strides = array<i32>} : memref<1x2x128xf32, #tpu.memory_space<vmem>>, vector<1x2x128xf32>,
    %cst_139 = arith.constant 0.699999988 : f32
    %221 = vector.broadcast %cst_139 : f32 to vector<2x128xf32>
    %222 = arith.cmpf ole, %212, %221 : vector<2x128xf32>
    %223 = arith.andi %3, %222 : vector<2x128xi1>
    %224 = arith.extui %3 : vector<2x128xi1> to vector<2x128xi32>
    %225 = arith.sitofp %224 : vector<2x128xi32> to vector<2x128xf32>
    %cst_140 = arith.constant dense<0.000000e+00> : vector<128xf32>
    %226 = vector.multi_reduction <add>, %225, %cst_140 [0] : vector<2x128xf32> to vector<128xf32>
    %227 = vector.shape_cast %226 : vector<128xf32> to vector<1x128xf32>
    %228 = arith.extui %223 : vector<2x128xi1> to vector<2x128xi32>
    %229 = arith.sitofp %228 : vector<2x128xi32> to vector<2x128xf32>
    %cst_141 = arith.constant dense<0.000000e+00> : vector<128xf32>
    %230 = vector.multi_reduction <add>, %229, %cst_141 [0] : vector<2x128xf32> to vector<128xf32>
    %231 = vector.shape_cast %230 : vector<128xf32> to vector<1x128xf32>
    %cst_142 = arith.constant 0.000000e+00 : f32
    %232 = vector.broadcast %cst_142 : f32 to vector<2x128xf32>
    %233 = arith.select %223, %208, %232 : vector<2x128xi1>, vector<2x128xf32>
    %cst_143 = arith.constant dense<0.000000e+00> : vector<128xf32>
    %234 = vector.multi_reduction <add>, %233, %cst_143 [0] : vector<2x128xf32> to vector<128xf32>
    %235 = vector.shape_cast %234 : vector<128xf32> to vector<1x128xf32>
    %cst_144 = arith.constant dense<0.000000e+00> : vector<128xf32>
    %236 = vector.multi_reduction <add>, %214, %cst_144 [0] : vector<2x128xf32> to vector<128xf32>
    %237 = vector.shape_cast %236 : vector<128xf32> to vector<1x128xf32>
    %c0_145 = arith.constant 0 : index
    %c0_146 = arith.constant 0 : index
    %c0_147 = arith.constant 0 : index
    %238 = vector.load %arg6[%c0_145, %c0_146, %c0_147] : memref<1x8x128xf32, #tpu.memory_space<vmem>>, vector<1x1x128xf32>
    %239 = vector.shape_cast %238 : vector<1x1x128xf32> to vector<1x128xf32>
    %240 = vector.shape_cast %227 : vector<1x128xf32> to vector<1x1x128xf32>
    tpu.vector_store %arg6[%c0_145, %c0_146, %c0_147], %240 {strides = array<i32>} : memref<1x8x128xf32, #tpu.memory_space<vmem>>, vector<1x1x128xf32>,
    %c0_148 = arith.constant 0 : index
    %c1_149 = arith.constant 1 : index
    %c0_150 = arith.constant 0 : index
    %241 = vector.load %arg6[%c0_148, %c1_149, %c0_150] : memref<1x8x128xf32, #tpu.memory_space<vmem>>, vector<1x1x128xf32>
    %242 = vector.shape_cast %241 : vector<1x1x128xf32> to vector<1x128xf32>
    %243 = vector.shape_cast %231 : vector<1x128xf32> to vector<1x1x128xf32>
    tpu.vector_store %arg6[%c0_148, %c1_149, %c0_150], %243 {strides = array<i32>} : memref<1x8x128xf32, #tpu.memory_space<vmem>>, vector<1x1x128xf32>,
    %c0_151 = arith.constant 0 : index
    %c2_152 = arith.constant 2 : index
    %c0_153 = arith.constant 0 : index
    %244 = vector.load %arg6[%c0_151, %c2_152, %c0_153] : memref<1x8x128xf32, #tpu.memory_space<vmem>>, vector<1x1x128xf32>
    %245 = vector.shape_cast %244 : vector<1x1x128xf32> to vector<1x128xf32>
    %246 = vector.shape_cast %235 : vector<1x128xf32> to vector<1x1x128xf32>
    tpu.vector_store %arg6[%c0_151, %c2_152, %c0_153], %246 {strides = array<i32>} : memref<1x8x128xf32, #tpu.memory_space<vmem>>, vector<1x1x128xf32>,
    %c0_154 = arith.constant 0 : index
    %c3_155 = arith.constant 3 : index
    %c0_156 = arith.constant 0 : index
    %247 = vector.load %arg6[%c0_154, %c3_155, %c0_156] : memref<1x8x128xf32, #tpu.memory_space<vmem>>, vector<1x1x128xf32>
    %248 = vector.shape_cast %247 : vector<1x1x128xf32> to vector<1x128xf32>
    %249 = vector.shape_cast %237 : vector<1x128xf32> to vector<1x1x128xf32>
    tpu.vector_store %arg6[%c0_154, %c3_155, %c0_156], %249 {strides = array<i32>} : memref<1x8x128xf32, #tpu.memory_space<vmem>>, vector<1x1x128xf32>,
    %cst_157 = arith.constant 0.000000e+00 : f32
    %250 = vector.broadcast %cst_157 : f32 to vector<4x128xf32>
    %c0_158 = arith.constant 0 : index
    %c4_159 = arith.constant 4 : index
    %c0_160 = arith.constant 0 : index
    %251 = vector.load %arg6[%c0_158, %c4_159, %c0_160] : memref<1x8x128xf32, #tpu.memory_space<vmem>>, vector<1x4x128xf32>
    %252 = vector.shape_cast %251 : vector<1x4x128xf32> to vector<4x128xf32>
    %253 = vector.shape_cast %250 : vector<4x128xf32> to vector<1x4x128xf32>
    tpu.vector_store %arg6[%c0_158, %c4_159, %c0_160], %253 {strides = array<i32>} : memref<1x8x128xf32, #tpu.memory_space<vmem>>, vector<1x4x128xf32>,
    return
  }
  func.func @transform_0(%arg0: i32, %arg1: i32) -> (i32, i32, i32, i32) {
    %c0_i32 = arith.constant 0 : i32
    %c0_i32_0 = arith.constant 0 : i32
    %c0_i32_1 = arith.constant 0 : i32
    return %arg0, %c0_i32, %arg1, %c0_i32_0 : i32, i32, i32, i32
  }
  func.func @transform_1(%arg0: i32, %arg1: i32) -> (i32, i32, i32) {
    %c0_i32 = arith.constant 0 : i32
    %c0_i32_0 = arith.constant 0 : i32
    return %arg0, %arg1, %c0_i32 : i32, i32, i32
  }
  func.func @transform_2(%arg0: i32, %arg1: i32) -> (i32, i32, i32) {
    %c0_i32 = arith.constant 0 : i32
    %c0_i32_0 = arith.constant 0 : i32
    return %arg0, %arg1, %c0_i32 : i32, i32, i32
  }
  func.func @transform_3(%arg0: i32, %arg1: i32) -> (i32, i32, i32) {
    %c0_i32 = arith.constant 0 : i32
    %c0_i32_0 = arith.constant 0 : i32
    return %arg0, %arg1, %c0_i32 : i32, i32, i32
  }
  func.func @transform_4(%arg0: i32, %arg1: i32) -> (i32, i32, i32) {
    %c0_i32 = arith.constant 0 : i32
    %c0_i32_0 = arith.constant 0 : i32
    return %arg0, %arg1, %c0_i32 : i32, i32, i32
  }
}

</mosaic_0001>

<llo_original>
// kernel: neg.0
$region0: #{neg.0}
  #allocation0 [shape = 's32[1]{0}', space=sflag, size = 0x4, scoped, tag = 'scoped memory for neg.0']
  %s0 = inlined_call_operand.vmem [shape: f32[2,2,128], index: 0, kind: input, shape index: {}]
  %s1 = inlined_call_operand.vmem [shape: f32[2,2,128], index: 1, kind: output, shape index: {}]
  %v2 = vld [vmem:[%s0] sm:$0x3]
  %3 = xla_tuple %v2
  %4 = xla_tuple %3
  %v5 = vxor.u32 %v2, 2147483648
  %6 = xla_tuple %v5
  %7 = vst [vmem:[%s1] sm:$0x3] %v5
  %s8 = scalar_lea.vmem %s0, 2
  %v9 = vld [vmem:[%s8] sm:$0x3]
  %10 = xla_tuple %v9
  %11 = xla_tuple %10
  %v12 = vxor.u32 %v9, 2147483648
  %13 = xla_tuple %v12
  %s14 = scalar_lea.vmem %s1, 2
  %15 = vst [vmem:[%s14] sm:$0x3] %v12

// kernel: ohem_cross_entropy_2d.1
$region0: #{ohem_cross_entropy_2d.1}
  #allocation0 [shape = 'u32[]', space=smem, size = 0x4, offset = 0x4, fixed_abs, tag = 'smem constant byte address 0x4 - core index']
  #allocation1 [shape = 'u32[144,128]{1,0:T(1,128)}', space=vmem, size = 0x12000, scoped, tag = 'internal scratch']
  %s0 = inlined_call_operand.vmem [shape: f32[2,19,2,128], index: 0, kind: input, shape index: {}]
  %s1 = inlined_call_operand.vmem [shape: s32[2,2,128], index: 1, kind: input, shape index: {}]
  %s2 = inlined_call_operand.vmem [shape: f32[2,2,128], index: 2, kind: output, shape index: {0}]
  %s3 = inlined_call_operand.vmem [shape: f32[2,2,128], index: 3, kind: output, shape index: {1}]
  %s4 = inlined_call_operand.vmem [shape: f32[2,8,128], index: 4, kind: output, shape index: {2}]
  %5 = xla_tuple %s2, %s3, %s4
  %s6 = sld [smem:[#allocation0]]
  $region57: #{ohem_cross_entropy_2d.1} parent=0
    _
  %s8 = ssub.s32 1, %s6
  %s9 = scalar_select 0, %s8, %s6
  loop: start=0, step=1, limit=4
  $region2: #{ohem_cross_entropy_2d.1} parent=0 // loop_pre_header
    _
  $region3: #{ohem_cross_entropy_2d.1} parent=0 // loop_header
    %s11 = sphi 0, %s15
    %p12 = scmp.ge.s32.totalorder %s11, 4
    %s18 = sphi 0, %s30
    %s19 = sphi 0, %s26
    %s20 = sphi 0, %s18
    %s21 = sphi 0, %s19
    %s22 = sphi 0, %s20
    %s23 = sphi 0, %s21
    %s35 = sphi 0, %s37
    %s38 = sphi 0, %s35
    %s39 = sphi 0, %s38
    %s55 = sphi 0, %s39
    %s63 = sphi 0, %s65
    %s66 = sphi 0, %s63
    %s67 = sphi 0, %s66
    %s83 = sphi 0, %s67
    %s91 = sphi 0, %s93
    %s94 = sphi 0, %s91
    %s95 = sphi 0, %s94
    %s111 = sphi 0, %s95
    %s119 = sphi 0, %s121
    %s122 = sphi 0, %s119
    %s123 = sphi 0, %s122
    %s139 = sphi 0, %s123
    %s147 = sphi 0, %s149
    %s150 = sphi 0, %s147
    %s151 = sphi 0, %s150
    %s167 = sphi 0, %s151
  $region4: #{ohem_cross_entropy_2d.1} parent=0 // loop_header_branch
    %14 = sbr.rel (%p12) target = $region8
  $region5: #{ohem_cross_entropy_2d.1} parent=0 // loop_body
    %s16 = ssub.s32 %s11, 1
    %s17 = ssub.s32 %s11, 2
    %s24 = sadd.s32 1, %s19
    %p25 = scmp.ge.s32.totalorder %s24, 1
    %s26 = scalar_select %p25, 0, %s24
    %s27 = sadd.s32 1, %s18
    %s28 = scalar_select %p25, %s27, %s18
    %p29 = scmp.ge.s32.totalorder %s28, 2
    %s30 = scalar_select %p29, 0, %s28
    %s31 = ssub.s32 %s18, %s30
    %s32 = ssub.s32 %s19, %s26
    %s33 = sor.u32 %s31, %s32
    %p34 = scmp.eq.s32.totalorder %s33, 0
    %s36 = sadd.s32 %s35, 1
    %s37 = scalar_select %p34, %s35, %s36
    %p40 = pneg %p34
    %p41 = scmp.eq.s32.totalorder %s11, 1
    %p42 = por %p40, %p41
    %p43 = scmp.ne.s32.totalorder %s35, %s38
    %p44 = scmp.eq.s32.totalorder %s11, 0
    %p45 = por %p43, %p44
    %p46 = scmp.ne.s32.totalorder %s35, %s38
    %p47 = scmp.eq.s32.totalorder %s16, 1
    %p48 = por %p46, %p47
    %p49 = scmp.ne.s32.totalorder %s38, %s39
    %p50 = scmp.eq.s32.totalorder %s16, 0
    %p51 = por %p49, %p50
    %p52 = scmp.ne.s32.totalorder %s38, %s39
    %p53 = scmp.eq.s32.totalorder %s17, 1
    %p54 = por %p52, %p53
    %p56 = scmp.ne.s32.totalorder %s39, %s55
    %p57 = scmp.eq.s32.totalorder %s17, 0
    %p58 = por %p56, %p57
    %s59 = ssub.s32 %s18, %s30
    %s60 = ssub.s32 %s19, %s26
    %s61 = sor.u32 %s59, %s60
    %p62 = scmp.eq.s32.totalorder %s61, 0
    %s64 = sadd.s32 %s63, 1
    %s65 = scalar_select %p62, %s63, %s64
    %p68 = pneg %p62
    %p69 = scmp.eq.s32.totalorder %s11, 1
    %p70 = por %p68, %p69
    %p71 = scmp.ne.s32.totalorder %s63, %s66
    %p72 = scmp.eq.s32.totalorder %s11, 0
    %p73 = por %p71, %p72
    %p74 = scmp.ne.s32.totalorder %s63, %s66
    %p75 = scmp.eq.s32.totalorder %s16, 1
    %p76 = por %p74, %p75
    %p77 = scmp.ne.s32.totalorder %s66, %s67
    %p78 = scmp.eq.s32.totalorder %s16, 0
    %p79 = por %p77, %p78
    %p80 = scmp.ne.s32.totalorder %s66, %s67
    %p81 = scmp.eq.s32.totalorder %s17, 1
    %p82 = por %p80, %p81
    %p84 = scmp.ne.s32.totalorder %s67, %s83
    %p85 = scmp.eq.s32.totalorder %s17, 0
    %p86 = por %p84, %p85
    %s87 = ssub.s32 %s18, %s30
    %s88 = ssub.s32 %s19, %s26
    %s89 = sor.u32 %s87, %s88
    %p90 = scmp.eq.s32.totalorder %s89, 0
    %s92 = sadd.s32 %s91, 1
    %s93 = scalar_select %p90, %s91, %s92
    %p96 = pneg %p90
    %p97 = scmp.eq.s32.totalorder %s11, 1
    %p98 = por %p96, %p97
    %p99 = scmp.ne.s32.totalorder %s91, %s94
    %p100 = scmp.eq.s32.totalorder %s11, 0
    %p101 = por %p99, %p100
    %p102 = scmp.ne.s32.totalorder %s91, %s94
    %p103 = scmp.eq.s32.totalorder %s16, 1
    %p104 = por %p102, %p103
    %p105 = scmp.ne.s32.totalorder %s94, %s95
    %p106 = scmp.eq.s32.totalorder %s16, 0
    %p107 = por %p105, %p106
    %p108 = scmp.ne.s32.totalorder %s94, %s95
    %p109 = scmp.eq.s32.totalorder %s17, 1
    %p110 = por %p108, %p109
    %p112 = scmp.ne.s32.totalorder %s95, %s111
    %p113 = scmp.eq.s32.totalorder %s17, 0
    %p114 = por %p112, %p113
    %s115 = ssub.s32 %s18, %s30
    %s116 = ssub.s32 %s19, %s26
    %s117 = sor.u32 %s115, %s116
    %p118 = scmp.eq.s32.totalorder %s117, 0
    %s120 = sadd.s32 %s119, 1
    %s121 = scalar_select %p118, %s119, %s120
    %p124 = pneg %p118
    %p125 = scmp.eq.s32.totalorder %s11, 1
    %p126 = por %p124, %p125
    %p127 = scmp.ne.s32.totalorder %s119, %s122
    %p128 = scmp.eq.s32.totalorder %s11, 0
    %p129 = por %p127, %p128
    %p130 = scmp.ne.s32.totalorder %s119, %s122
    %p131 = scmp.eq.s32.totalorder %s16, 1
    %p132 = por %p130, %p131
    %p133 = scmp.ne.s32.totalorder %s122, %s123
    %p134 = scmp.eq.s32.totalorder %s16, 0
    %p135 = por %p133, %p134
    %p136 = scmp.ne.s32.totalorder %s122, %s123
    %p137 = scmp.eq.s32.totalorder %s17, 1
    %p138 = por %p136, %p137
    %p140 = scmp.ne.s32.totalorder %s123, %s139
    %p141 = scmp.eq.s32.totalorder %s17, 0
    %p142 = por %p140, %p141
    %s143 = ssub.s32 %s18, %s30
    %s144 = ssub.s32 %s19, %s26
    %s145 = sor.u32 %s143, %s144
    %p146 = scmp.eq.s32.totalorder %s145, 0
    %s148 = sadd.s32 %s147, 1
    %s149 = scalar_select %p146, %s147, %s148
    %p152 = pneg %p146
    %p153 = scmp.eq.s32.totalorder %s11, 1
    %p154 = por %p152, %p153
    %p155 = scmp.ne.s32.totalorder %s147, %s150
    %p156 = scmp.eq.s32.totalorder %s11, 0
    %p157 = por %p155, %p156
    %p158 = scmp.ne.s32.totalorder %s147, %s150
    %p159 = scmp.eq.s32.totalorder %s16, 1
    %p160 = por %p158, %p159
    %p161 = scmp.ne.s32.totalorder %s150, %s151
    %p162 = scmp.eq.s32.totalorder %s16, 0
    %p163 = por %p161, %p162
    %p164 = scmp.ne.s32.totalorder %s150, %s151
    %p165 = scmp.eq.s32.totalorder %s17, 1
    %p166 = por %p164, %p165
    %p168 = scmp.ne.s32.totalorder %s151, %s167
    %p169 = scmp.eq.s32.totalorder %s17, 0
    %p170 = por %p168, %p169
    %p171 = scmp.le.s32.totalorder 1, %s11
    %p172 = scmp.lt.s32.totalorder %s11, 3
    %p173 = pnand %p171, %p172
    %p174 = pneg %p173
    // Predicated region
    $region9: #{ohem_cross_entropy_2d.1} parent=5 // pred_check
      _
    $region10: #{ohem_cross_entropy_2d.1} parent=5 // pred_check_branch
      %176 = sbr.rel (%p173) target = $region12
    $region11: #{ohem_cross_entropy_2d.1} parent=5 // pred_region
      %s177 = ssub.s32 %s11, 1
    $region12: #{ohem_cross_entropy_2d.1} parent=5 // pred_fallthru
      _
    %p178 = scmp.lt.s32.totalorder %s11, 2
    // Predicated region
    $region13: #{ohem_cross_entropy_2d.1} parent=5 // pred_check
      %p179 = pneg %p178
    $region14: #{ohem_cross_entropy_2d.1} parent=5 // pred_check_branch
      %181 = sbr.rel (%p179) target = $region16
    $region15: #{ohem_cross_entropy_2d.1} parent=5 // pred_region
      // Predicated region
      $region17: #{ohem_cross_entropy_2d.1} parent=15 // pred_check
        %p182 = pneg %p45
      $region18: #{ohem_cross_entropy_2d.1} parent=15 // pred_check_branch
        %184 = sbr.rel (%p182) target = $region20
      $region19: #{ohem_cross_entropy_2d.1} parent=15 // pred_region
        %p185 = scmp.lt.s32.totalorder %s18, 1
        %s186 = scalar_select %p185, %s18, 1
        %p187 = scmp.lt.s32.totalorder %s19, 0
        %s188 = scalar_select %p187, %s19, 0
        %s189 = smul.addr %s186, 19
        %s190 = sadd.s32 %s188, %s189
        %s191 = smul.addr %s190, 2
        %s192 = scalar_lea.vmem %s0, %s191
      $region20: #{ohem_cross_entropy_2d.1} parent=15 // pred_fallthru
        _
      // Predicated region
      $region21: #{ohem_cross_entropy_2d.1} parent=15 // pred_check
        %p193 = pneg %p73
      $region22: #{ohem_cross_entropy_2d.1} parent=15 // pred_check_branch
        %195 = sbr.rel (%p193) target = $region24
      $region23: #{ohem_cross_entropy_2d.1} parent=15 // pred_region
        %p196 = scmp.lt.s32.totalorder %s18, 1
        %s197 = scalar_select %p196, %s18, 1
        %p198 = scmp.lt.s32.totalorder %s19, 0
        %s199 = scalar_select %p198, %s19, 0
        %s200 = sadd.s32 %s199, %s197
        %s201 = smul.addr %s200, 2
        %s202 = scalar_lea.vmem %s1, %s201
      $region24: #{ohem_cross_entropy_2d.1} parent=15 // pred_fallthru
        _
    $region16: #{ohem_cross_entropy_2d.1} parent=5 // pred_fallthru
      _
    %p203 = scmp.le.s32.totalorder 1, %s11
    %p204 = scmp.lt.s32.totalorder %s11, 3
    %p205 = pnand %p203, %p204
    %p206 = pneg %p205
    // Predicated region
    $region25: #{ohem_cross_entropy_2d.1} parent=5 // pred_check
      _
    $region26: #{ohem_cross_entropy_2d.1} parent=5 // pred_check_branch
      %208 = sbr.rel (%p205) target = $region28
    $region27: #{ohem_cross_entropy_2d.1} parent=5 // pred_region
      %s209 = ssub.s32 %s11, 1
      %p210 = scmp.lt.s32.totalorder %s20, 1
      %s211 = scalar_select %p210, %s20, 1
      %p212 = scmp.lt.s32.totalorder %s21, 0
      %s213 = scalar_select %p212, %s21, 0
      %s214 = smul.addr %s211, 19
      %s215 = sadd.s32 %s213, %s214
      %s216 = smul.addr %s215, 2
      %s217 = scalar_lea.vmem %s0, %s216
      %p218 = pneg %p51
      %p219 = pneg %p48
      %p220 = scmp.lt.s32.totalorder %s20, 1
      %s221 = scalar_select %p220, %s20, 1
      %p222 = scmp.lt.s32.totalorder %s21, 0
      %s223 = scalar_select %p222, %s21, 0
      %s224 = sadd.s32 %s223, %s221
      %s225 = smul.addr %s224, 2
      %s226 = scalar_lea.vmem %s1, %s225
      %p227 = pneg %p79
      %p228 = pneg %p76
      %p229 = pneg %p107
      %p230 = pneg %p104
      %p231 = scmp.lt.s32.totalorder %s20, 1
      %s232 = scalar_select %p231, %s20, 1
      %p233 = scmp.lt.s32.totalorder %s21, 0
      %s234 = scalar_select %p233, %s21, 0
      %s235 = sadd.s32 %s234, %s232
      %s236 = smul.addr %s235, 2
      %s237 = scalar_lea.vmem %s2, %s236
      %p238 = pneg %p135
      %p239 = pneg %p132
      %p240 = scmp.lt.s32.totalorder %s20, 1
      %s241 = scalar_select %p240, %s20, 1
      %p242 = scmp.lt.s32.totalorder %s21, 0
      %s243 = scalar_select %p242, %s21, 0
      %s244 = sadd.s32 %s243, %s241
      %s245 = smul.addr %s244, 2
      %s246 = scalar_lea.vmem %s3, %s245
      %p247 = pneg %p163
      %p248 = pneg %p160
      %p249 = scmp.lt.s32.totalorder %s20, 1
      %s250 = scalar_select %p249, %s20, 1
      %p251 = scmp.lt.s32.totalorder %s21, 0
      %s252 = scalar_select %p251, %s21, 0
      %s253 = sadd.s32 %s252, %s250
      %s254 = smul.addr %s253, 8
      %s255 = scalar_lea.vmem %s4, %s254
      %p256 = scmp.lt.s32.totalorder %s20, 1
      %s257 = scalar_select %p256, %s20, 1
      %p258 = scmp.lt.s32.totalorder %s21, 0
      %s259 = scalar_select %p258, %s21, 0
      %s260 = smul.addr %s257, 19
      %s261 = sadd.s32 %s259, %s260
      %s262 = smul.addr %s261, 2
      %s263 = scalar_lea.vmem %s0, %s262
      %p264 = scmp.lt.s32.totalorder %s20, 1
      %s265 = scalar_select %p264, %s20, 1
      %p266 = scmp.lt.s32.totalorder %s21, 0
      %s267 = scalar_select %p266, %s21, 0
      %s268 = sadd.s32 %s267, %s265
      %s269 = smul.addr %s268, 2
      %s270 = scalar_lea.vmem %s1, %s269
      %p271 = scmp.lt.s32.totalorder %s20, 1
      %s272 = scalar_select %p271, %s20, 1
      %p273 = scmp.lt.s32.totalorder %s21, 0
      %s274 = scalar_select %p273, %s21, 0
      %s275 = sadd.s32 %s274, %s272
      %s276 = smul.addr %s275, 2
      %s277 = scalar_lea.vmem %s2, %s276
      %p278 = scmp.lt.s32.totalorder %s20, 1
      %s279 = scalar_select %p278, %s20, 1
      %p280 = scmp.lt.s32.totalorder %s21, 0
      %s281 = scalar_select %p280, %s21, 0
      %s282 = sadd.s32 %s281, %s279
      %s283 = smul.addr %s282, 2
      %s284 = scalar_lea.vmem %s3, %s283
      %p285 = scmp.lt.s32.totalorder %s20, 1
      %s286 = scalar_select %p285, %s20, 1
      %p287 = scmp.lt.s32.totalorder %s21, 0
      %s288 = scalar_select %p287, %s21, 0
      %s289 = sadd.s32 %s288, %s286
      %s290 = smul.addr %s289, 8
      %s291 = scalar_lea.vmem %s4, %s290
      %v292 = vld [vmem:[%s270] sm:$0x3]
      %vm293 = vcmp.ne.s32.totalorder %v292, 255
      %v294 = vld [vmem:[%s263] sm:$0x3]
      %s295 = scalar_lea.vmem %s263, 2
      %v296 = vld [vmem:[%s295] sm:$0x3]
      %v297 = vmax.f32 %v294, %v296
      %vm298 = vcmp.eq.s32.totalorder %v292, 1
      %v299 = vsel %vm298, %v296, %v294
      %s300 = scalar_lea.vmem %s263, 4
      %v301 = vld [vmem:[%s300] sm:$0x3]
      %v302 = vmax.f32 %v297, %v301
      %vm303 = vcmp.eq.s32.totalorder %v292, 2
      %v304 = vsel %vm303, %v301, %v299
      %s305 = scalar_lea.vmem %s263, 6
      %v306 = vld [vmem:[%s305] sm:$0x3]
      %v307 = vmax.f32 %v302, %v306
      %vm308 = vcmp.eq.s32.totalorder %v292, 3
      %v309 = vsel %vm308, %v306, %v304
      %s310 = scalar_lea.vmem %s263, 8
      %v311 = vld [vmem:[%s310] sm:$0x3]
      %v312 = vmax.f32 %v307, %v311
      %vm313 = vcmp.eq.s32.totalorder %v292, 4
      %v314 = vsel %vm313, %v311, %v309
      %s315 = scalar_lea.vmem %s263, 10
      %v316 = vld [vmem:[%s315] sm:$0x3]
      %v317 = vmax.f32 %v312, %v316
      %vm318 = vcmp.eq.s32.totalorder %v292, 5
      %v319 = vsel %vm318, %v316, %v314
      %s320 = scalar_lea.vmem %s263, 12
      %v321 = vld [vmem:[%s320] sm:$0x3]
      %v322 = vmax.f32 %v317, %v321
      %vm323 = vcmp.eq.s32.totalorder %v292, 6
      %v324 = vsel %vm323, %v321, %v319
      %s325 = scalar_lea.vmem %s263, 14
      %v326 = vld [vmem:[%s325] sm:$0x3]
      %v327 = vmax.f32 %v322, %v326
      %vm328 = vcmp.eq.s32.totalorder %v292, 7
      %v329 = vsel %vm328, %v326, %v324
      %s330 = scalar_lea.vmem %s263, 16
      %v331 = vld [vmem:[%s330] sm:$0x3]
      %v332 = vmax.f32 %v327, %v331
      %vm333 = vcmp.eq.s32.totalorder %v292, 8
      %v334 = vsel %vm333, %v331, %v329
      %s335 = scalar_lea.vmem %s263, 18
      %v336 = vld [vmem:[%s335] sm:$0x3]
      %v337 = vmax.f32 %v332, %v336
      %vm338 = vcmp.eq.s32.totalorder %v292, 9
      %v339 = vsel %vm338, %v336, %v334
      %s340 = scalar_lea.vmem %s263, 20
      %v341 = vld [vmem:[%s340] sm:$0x3]
      %v342 = vmax.f32 %v337, %v341
      %vm343 = vcmp.eq.s32.totalorder %v292, 10
      %v344 = vsel %vm343, %v341, %v339
      %s345 = scalar_lea.vmem %s263, 22
      %v346 = vld [vmem:[%s345] sm:$0x3]
      %v347 = vmax.f32 %v342, %v346
      %vm348 = vcmp.eq.s32.totalorder %v292, 11
      %v349 = vsel %vm348, %v346, %v344
      %s350 = scalar_lea.vmem %s263, 24
      %v351 = vld [vmem:[%s350] sm:$0x3]
      %v352 = vmax.f32 %v347, %v351
      %vm353 = vcmp.eq.s32.totalorder %v292, 12
      %v354 = vsel %vm353, %v351, %v349
      %s355 = scalar_lea.vmem %s263, 26
      %v356 = vld [vmem:[%s355] sm:$0x3]
      %v357 = vmax.f32 %v352, %v356
      %vm358 = vcmp.eq.s32.totalorder %v292, 13
      %v359 = vsel %vm358, %v356, %v354
      %s360 = scalar_lea.vmem %s263, 28
      %v361 = vld [vmem:[%s360] sm:$0x3]
      %v362 = vmax.f32 %v357, %v361
      %vm363 = vcmp.eq.s32.totalorder %v292, 14
      %v364 = vsel %vm363, %v361, %v359
      %s365 = scalar_lea.vmem %s263, 30
      %v366 = vld [vmem:[%s365] sm:$0x3]
      %v367 = vmax.f32 %v362, %v366
      %vm368 = vcmp.eq.s32.totalorder %v292, 15
      %v369 = vsel %vm368, %v366, %v364
      %s370 = scalar_lea.vmem %s263, 32
      %v371 = vld [vmem:[%s370] sm:$0x3]
      %v372 = vmax.f32 %v367, %v371
      %vm373 = vcmp.eq.s32.totalorder %v292, 16
      %v374 = vsel %vm373, %v371, %v369
      %s375 = scalar_lea.vmem %s263, 34
      %v376 = vld [vmem:[%s375] sm:$0x3]
      %v377 = vmax.f32 %v372, %v376
      %vm378 = vcmp.eq.s32.totalorder %v292, 17
      %v379 = vsel %vm378, %v376, %v374
      %s380 = scalar_lea.vmem %s263, 36
      %v381 = vld [vmem:[%s380] sm:$0x3]
      %v382 = vmax.f32 %v377, %v381
      %vm383 = vcmp.eq.s32.totalorder %v292, 18
      %v384 = vsel %vm383, %v381, %v379
      %v385 = vsub.f32 %v294, %v382
      %v386 = vmul.f32 %v385, 1.442695
      %v387 = vpow.pop %v386
      %v388 = vsub.f32 %v296, %v382
      %v389 = vmul.f32 %v388, 1.442695
      %v390 = vpow.pop %v389
      %v391 = vadd.f32 %v387, %v390
      %v392 = vsub.f32 %v301, %v382
      %v393 = vmul.f32 %v392, 1.442695
      %v394 = vpow.pop %v393
      %v395 = vadd.f32 %v391, %v394
      %v396 = vsub.f32 %v306, %v382
      %v397 = vmul.f32 %v396, 1.442695
      %v398 = vpow.pop %v397
      %v399 = vadd.f32 %v395, %v398
      %v400 = vsub.f32 %v311, %v382
      %v401 = vmul.f32 %v400, 1.442695
      %v402 = vpow.pop %v401
      %v403 = vadd.f32 %v399, %v402
      %v404 = vsub.f32 %v316, %v382
      %v405 = vmul.f32 %v404, 1.442695
      %v406 = vpow.pop %v405
      %v407 = vadd.f32 %v403, %v406
      %v408 = vsub.f32 %v321, %v382
      %v409 = vmul.f32 %v408, 1.442695
      %v410 = vpow.pop %v409
      %v411 = vadd.f32 %v407, %v410
      %v412 = vsub.f32 %v326, %v382
      %v413 = vmul.f32 %v412, 1.442695
      %v414 = vpow.pop %v413
      %v415 = vadd.f32 %v411, %v414
      %v416 = vsub.f32 %v331, %v382
      %v417 = vmul.f32 %v416, 1.442695
      %v418 = vpow.pop %v417
      %v419 = vadd.f32 %v415, %v418
      %v420 = vsub.f32 %v336, %v382
      %v421 = vmul.f32 %v420, 1.442695
      %v422 = vpow.pop %v421
      %v423 = vadd.f32 %v419, %v422
      %v424 = vsub.f32 %v341, %v382
      %v425 = vmul.f32 %v424, 1.442695
      %v426 = vpow.pop %v425
      %v427 = vadd.f32 %v423, %v426
      %v428 = vsub.f32 %v346, %v382
      %v429 = vmul.f32 %v428, 1.442695
      %v430 = vpow.pop %v429
      %v431 = vadd.f32 %v427, %v430
      %v432 = vsub.f32 %v351, %v382
      %v433 = vmul.f32 %v432, 1.442695
      %v434 = vpow.pop %v433
      %v435 = vadd.f32 %v431, %v434
      %v436 = vsub.f32 %v356, %v382
      %v437 = vmul.f32 %v436, 1.442695
      %v438 = vpow.pop %v437
      %v439 = vadd.f32 %v435, %v438
      %v440 = vsub.f32 %v361, %v382
      %v441 = vmul.f32 %v440, 1.442695
      %v442 = vpow.pop %v441
      %v443 = vadd.f32 %v439, %v442
      %v444 = vsub.f32 %v366, %v382
      %v445 = vmul.f32 %v444, 1.442695
      %v446 = vpow.pop %v445
      %v447 = vadd.f32 %v443, %v446
      %v448 = vsub.f32 %v371, %v382
      %v449 = vmul.f32 %v448, 1.442695
      %v450 = vpow.pop %v449
      %v451 = vadd.f32 %v447, %v450
      %v452 = vsub.f32 %v376, %v382
      %v453 = vmul.f32 %v452, 1.442695
      %v454 = vpow.pop %v453
      %v455 = vadd.f32 %v451, %v454
      %v456 = vsub.f32 %v381, %v382
      %v457 = vmul.f32 %v456, 1.442695
      %v458 = vpow.pop %v457
      %v459 = vadd.f32 %v455, %v458
      %v460 = vlog2.pop %v459
      %v461 = vmul.f32 %v460, 0.6931472
      %v462 = vadd.f32 %v382, %v461
      %v463 = vsub.f32 %v462, %v384
      %v464 = vsub.f32 %v384, %v462
      %v465 = vmul.f32 %v464, 1.442695
      %v466 = vpow.pop %v465
      %v467 = vsel %vm293, %v466, 1.0
      %v468 = vsel %vm293, %v463, 0.0
      %469 = vst [vmem:[%s277] sm:$0x3] %v467
      %470 = vst [vmem:[%s284] sm:$0x3] %v468
      %vm471 = vcmp.le.f32.partialorder %v467, 0.7
      %vm472 = vmand %vm293, %vm471
      %v473 = vsel %vm293, 1, 0
      %v474 = vcvt.s32.f32 %v473
      %vm475 = vcmask 1041408
      %v476 = vsel %vm475, %v474, 0.0
      %v477 = vrot.slane %v476, 4
      %v478 = vadd.f32 %v476, %v477
      %v479 = vrot.slane %v478, 2
      %v480 = vadd.f32 %v478, %v479
      %v481 = vrot.slane %v480, 1
      %v482 = vadd.f32 %v480, %v481
      %v483 = vsel %vm472, 1, 0
      %v484 = vcvt.s32.f32 %v483
      %v485 = vsel %vm475, %v484, 0.0
      %v486 = vrot.slane %v485, 4
      %v487 = vadd.f32 %v485, %v486
      %v488 = vrot.slane %v487, 2
      %v489 = vadd.f32 %v487, %v488
      %v490 = vrot.slane %v489, 1
      %v491 = vadd.f32 %v489, %v490
      %v492 = vsel %vm472, %v463, 0.0
      %v493 = vsel %vm475, %v492, 0.0
      %v494 = vrot.slane %v493, 4
      %v495 = vadd.f32 %v493, %v494
      %v496 = vrot.slane %v495, 2
      %v497 = vadd.f32 %v495, %v496
      %v498 = vrot.slane %v497, 1
      %v499 = vadd.f32 %v497, %v498
      %v500 = vsel %vm475, %v468, 0.0
      %v501 = vrot.slane %v500, 4
      %v502 = vadd.f32 %v500, %v501
      %v503 = vrot.slane %v502, 2
      %v504 = vadd.f32 %v502, %v503
      %v505 = vrot.slane %v504, 1
      %v506 = vadd.f32 %v504, %v505
      %507 = vst [vmem:[%s291] sm:$0x1] %v482
      %508 = vst [vmem:[%s291 + $0x1] sm:$0x1] %v491
      %509 = vst [vmem:[%s291 + $0x2] sm:$0x1] %v499
      %510 = vst [vmem:[%s291 + $0x3] sm:$0x1] %v506
      %511 = vst [vmem:[%s291 + $0x4] sm:$0xf] 0.0
      %p512 = scmp.lt.s32.totalorder %s20, 1
      %s513 = scalar_select %p512, %s20, 1
      %p514 = scmp.lt.s32.totalorder %s21, 0
      %s515 = scalar_select %p514, %s21, 0
      %s516 = sadd.s32 %s515, %s513
      %s517 = smul.addr %s516, 2
      %s518 = scalar_lea.vmem %s2, %s517
      %p519 = scmp.lt.s32.totalorder %s20, 1
      %s520 = scalar_select %p519, %s20, 1
      %p521 = scmp.lt.s32.totalorder %s21, 0
      %s522 = scalar_select %p521, %s21, 0
      %s523 = sadd.s32 %s522, %s520
      %s524 = smul.addr %s523, 2
      %s525 = scalar_lea.vmem %s3, %s524
      %p526 = scmp.lt.s32.totalorder %s20, 1
      %s527 = scalar_select %p526, %s20, 1
      %p528 = scmp.lt.s32.totalorder %s21, 0
      %s529 = scalar_select %p528, %s21, 0
      %s530 = sadd.s32 %s529, %s527
      %s531 = smul.addr %s530, 8
      %s532 = scalar_lea.vmem %s4, %s531
      // Predicated region
      $region29: #{ohem_cross_entropy_2d.1} parent=27 // pred_check
        %p533 = pneg %p104
      $region30: #{ohem_cross_entropy_2d.1} parent=27 // pred_check_branch
        %535 = sbr.rel (%p533) target = $region32
      $region31: #{ohem_cross_entropy_2d.1} parent=27 // pred_region
        _
      $region32: #{ohem_cross_entropy_2d.1} parent=27 // pred_fallthru
        _
      // Predicated region
      $region33: #{ohem_cross_entropy_2d.1} parent=27 // pred_check
        %p536 = pneg %p132
      $region34: #{ohem_cross_entropy_2d.1} parent=27 // pred_check_branch
        %538 = sbr.rel (%p536) target = $region36
      $region35: #{ohem_cross_entropy_2d.1} parent=27 // pred_region
        _
      $region36: #{ohem_cross_entropy_2d.1} parent=27 // pred_fallthru
        _
      // Predicated region
      $region37: #{ohem_cross_entropy_2d.1} parent=27 // pred_check
        %p539 = pneg %p160
      $region38: #{ohem_cross_entropy_2d.1} parent=27 // pred_check_branch
        %541 = sbr.rel (%p539) target = $region40
      $region39: #{ohem_cross_entropy_2d.1} parent=27 // pred_region
        _
      $region40: #{ohem_cross_entropy_2d.1} parent=27 // pred_fallthru
        _
    $region28: #{ohem_cross_entropy_2d.1} parent=5 // pred_fallthru
      _
    %p542 = scmp.le.s32.totalorder 2, %s11
    // Predicated region
    $region41: #{ohem_cross_entropy_2d.1} parent=5 // pred_check
      %p543 = pneg %p542
    $region42: #{ohem_cross_entropy_2d.1} parent=5 // pred_check_branch
      %545 = sbr.rel (%p543) target = $region44
    $region43: #{ohem_cross_entropy_2d.1} parent=5 // pred_region
      %s546 = ssub.s32 %s11, 2
      // Predicated region
      $region45: #{ohem_cross_entropy_2d.1} parent=43 // pred_check
        %p547 = pneg %p110
      $region46: #{ohem_cross_entropy_2d.1} parent=43 // pred_check_branch
        %549 = sbr.rel (%p547) target = $region48
      $region47: #{ohem_cross_entropy_2d.1} parent=43 // pred_region
        %p550 = scmp.lt.s32.totalorder %s22, 1
        %s551 = scalar_select %p550, %s22, 1
        %p552 = scmp.lt.s32.totalorder %s23, 0
        %s553 = scalar_select %p552, %s23, 0
        %s554 = sadd.s32 %s553, %s551
        %s555 = smul.addr %s554, 2
        %s556 = scalar_lea.vmem %s2, %s555
      $region48: #{ohem_cross_entropy_2d.1} parent=43 // pred_fallthru
        _
      // Predicated region
      $region49: #{ohem_cross_entropy_2d.1} parent=43 // pred_check
        %p557 = pneg %p138
      $region50: #{ohem_cross_entropy_2d.1} parent=43 // pred_check_branch
        %559 = sbr.rel (%p557) target = $region52
      $region51: #{ohem_cross_entropy_2d.1} parent=43 // pred_region
        %p560 = scmp.lt.s32.totalorder %s22, 1
        %s561 = scalar_select %p560, %s22, 1
        %p562 = scmp.lt.s32.totalorder %s23, 0
        %s563 = scalar_select %p562, %s23, 0
        %s564 = sadd.s32 %s563, %s561
        %s565 = smul.addr %s564, 2
        %s566 = scalar_lea.vmem %s3, %s565
      $region52: #{ohem_cross_entropy_2d.1} parent=43 // pred_fallthru
        _
      // Predicated region
      $region53: #{ohem_cross_entropy_2d.1} parent=43 // pred_check
        %p567 = pneg %p166
      $region54: #{ohem_cross_entropy_2d.1} parent=43 // pred_check_branch
        %569 = sbr.rel (%p567) target = $region56
      $region55: #{ohem_cross_entropy_2d.1} parent=43 // pred_region
        %p570 = scmp.lt.s32.totalorder %s22, 1
        %s571 = scalar_select %p570, %s22, 1
        %p572 = scmp.lt.s32.totalorder %s23, 0
        %s573 = scalar_select %p572, %s23, 0
        %s574 = sadd.s32 %s573, %s571
        %s575 = smul.addr %s574, 8
        %s576 = scalar_lea.vmem %s4, %s575
      $region56: #{ohem_cross_entropy_2d.1} parent=43 // pred_fallthru
        _
    $region44: #{ohem_cross_entropy_2d.1} parent=5 // pred_fallthru
      _
  $region6: #{ohem_cross_entropy_2d.1} parent=0 // loop_footer
    %s15 = sadd.s32 1, %s11
  $region7: #{ohem_cross_entropy_2d.1} parent=0 // loop_footer_branch
    %10 = sbr.rel target = $region3
  $region8: #{ohem_cross_entropy_2d.1} parent=0 // loop_exit
    _

</llo_original>
